<compile_context>
chip_gen: v7x
topology: tpu7x:2x2x1
jax: 0.10.0
libtpu: 0.0.40
codegen_flags: <defaults>
</compile_context>

<pallas_src>
import numpy as np
import jax
import jax.numpy as jnp
from jax.experimental import pallas as pl
from jax.experimental.pallas import tpu as pltpu


def cs_fused_kernel(x_ref, m_ref, y_ref):
    """Fast path.  One MXU matmul per Mp tile.

    x_ref : (Bp, N)       bf16  sign/DFT-fused input rows (resident across the grid)
    m_ref : (N, tile_n)   bf16  fused operator tile (streamed, pipelined)
    y_ref : (Bp, tile_n)  f32   measurements tile (lane-dense)
    """
    y_ref[...] = jnp.dot(x_ref[...], m_ref[...], preferred_element_type=jnp.float32)


def cs_fused_split_kernel(x_ref, mhi_ref, mlo_ref, y_ref):
    """High-accuracy path: bf16 hi/lo split of x and of the operator (3 MXU passes).

    x_ref   : (Bp, N)      f32
    mhi_ref : (N, tile_n)  bf16   bf16(M)
    mlo_ref : (N, tile_n)  bf16   bf16(M - f32(bf16(M)))
    y_ref   : (Bp, tile_n) f32
    """
    x = x_ref[...]
    x_hi = x.astype(jnp.bfloat16)
    x_lo = (x - x_hi.astype(jnp.float32)).astype(jnp.bfloat16)
    mhi = mhi_ref[...]
    mlo = mlo_ref[...]
    acc = jnp.dot(x_hi, mhi, preferred_element_type=jnp.float32)
    acc = acc + jnp.dot(x_lo, mhi, preferred_element_type=jnp.float32)
    acc = acc + jnp.dot(x_hi, mlo, preferred_element_type=jnp.float32)
    y_ref[...] = acc


def make_cs_operator(A, sign_pattern, indices, precision="default"):
    """Precompute the fused operator once; return a jitted batched forward callable.

    A            : (n_input,)         operator vector
    sign_pattern : (n_input,)         +/-1 sign pattern
    indices      : (n_measurements,)  gather indices
    precision    : "default" (bf16 MXU) or "high" (bf16 hi/lo split, ~f32 accuracy)

    Returned fn(x): x is (side, side) or (B, side, side) -> (n_meas,) or (B, n_meas).
    """
    A = np.asarray(A, dtype=np.float64)
    s = np.asarray(sign_pattern, dtype=np.float64)
    idx = np.asarray(indices, dtype=np.int64)

    n_input = int(A.shape[0])
    n_meas = int(idx.shape[0])
    side = int(round(np.sqrt(n_input)))
    assert side * side == n_input, "n_input must be a perfect square"

    # ------------------------------------------------------------------ host constants
    # ifft(fft(u,'ortho') * fft(A,'ortho'), 'ortho')[k] = (1/sqrt(N)) * sum_n u[n] A[(k-n)%N]
    # (circular convolution, exactly real for real u, A).  Folding the sign modulation and
    # the index gather gives a single real (N, M) matrix:
    #   y[k] = sum_n x[n] * s[n] * A[(indices[k]-n) % N] / sqrt(N)
    n = np.arange(n_input, dtype=np.int64)
    gather_idx = (idx[None, :] - n[:, None]) % n_input              # (N, M)
    Mt = (s[:, None] * A[gather_idx]) / np.sqrt(float(n_input))     # (N, M), float64

    # Lane-pad the measurement axis and pick an Mp tile (multiple of 128, modest VMEM).
    m_pad = ((n_meas + 127) // 128) * 128
    n_mats = 1 if precision == "default" else 2
    tile_n = 128
    for cand in (1024, 512, 256, 128):
        if m_pad % cand != 0:
            continue
        # double-buffered bf16 operator tiles must stay well inside scoped VMEM (v5e 16MiB)
        if 2 * n_mats * n_input * cand * 2 <= (8 << 20):
            tile_n = cand
            break

    Mt_pad = np.zeros((n_input, m_pad), dtype=np.float64)
    Mt_pad[:, :n_meas] = Mt
    m_f32 = jnp.asarray(Mt_pad.astype(np.float32))

    if precision == "default":
        mats = (m_f32.astype(jnp.bfloat16),)
        kernel = cs_fused_kernel
        x_dtype = jnp.bfloat16
    else:
        m_hi = m_f32.astype(jnp.bfloat16)
        m_lo = (m_f32 - m_hi.astype(jnp.float32)).astype(jnp.bfloat16)
        mats = (m_hi, m_lo)
        kernel = cs_fused_split_kernel
        x_dtype = jnp.float32

    grid = (m_pad // tile_n,)

    # ------------------------------------------------------------------ jitted forward
    @jax.jit
    def forward(x):
        x = jnp.asarray(x, dtype=jnp.float32)
        squeeze = (x.ndim == 2)
        if squeeze:
            x = x[None]
        b = x.shape[0]
        x_rows = x.reshape(b, n_input).astype(x_dtype)
        b_pad = ((b + 7) // 8) * 8                         # sublane-aligned batch
        if b_pad != b:
            x_rows = jnp.pad(x_rows, ((0, b_pad - b), (0, 0)))

        x_spec = pl.BlockSpec((b_pad, n_input), lambda j: (0, 0))     # resident
        m_spec = pl.BlockSpec((n_input, tile_n), lambda j: (0, j))    # streamed tiles
        out_spec = pl.BlockSpec((b_pad, tile_n), lambda j: (0, j))    # lane-dense

        y = pl.pallas_call(
            kernel,
            out_shape=jax.ShapeDtypeStruct((b_pad, m_pad), jnp.float32),
            grid_spec=pltpu.PrefetchScalarGridSpec(
                num_scalar_prefetch=0,
                grid=grid,
                in_specs=[x_spec] + [m_spec] * len(mats),
                out_specs=out_spec,
            ),
            compiler_params=pltpu.CompilerParams(
                dimension_semantics=("parallel",)),
        )(x_rows, *mats)

        y = y[:b, :n_meas]
        return y[0] if squeeze else y

    return forward


def _reference_forward(x_flat, A, sign_pattern, indices):
    """float64 numpy reference matching the PyTorch (FFT-based) semantics exactly."""
    z = np.fft.ifft(
        np.fft.fft(x_flat * sign_pattern, norm='ortho')
        * np.fft.fft(A, norm='ortho'),
        norm='ortho',
    )
    return np.real(z)[indices]


if __name__ == "__main__":
    # Small problem consistent with the module: 16x16 image -> n_input = 256.
    n_input = 256
    side = int(np.sqrt(n_input))
    n_measurements = 128
    batch = 8

    key = jax.random.PRNGKey(0)
    k_x, k_a, k_s, k_i = jax.random.split(key, 4)

    xb = jax.random.normal(k_x, (batch, side, side), dtype=jnp.float32)
    A = jax.random.normal(k_a, (n_input,), dtype=jnp.float32)
    sign_pattern = jnp.sign(jax.random.normal(k_s, (n_input,), dtype=jnp.float32))
    sign_pattern = jnp.where(sign_pattern == 0, 1.0, sign_pattern).astype(jnp.float32)
    indices = jax.random.permutation(k_i, n_input)[:n_measurements].astype(jnp.int32)

    A_np = np.asarray(A, dtype=np.float64)
    s_np = np.asarray(sign_pattern, dtype=np.float64)
    idx_np = np.asarray(indices)
    xb_np = np.asarray(xb, dtype=np.float64).reshape(batch, n_input)
    y_ref = np.stack([_reference_forward(xb_np[b], A_np, s_np, idx_np)
                      for b in range(batch)], axis=0)

    # --- fast path: bf16 fused operator, single MXU matmul per tile --------------------
    cs_op = make_cs_operator(np.asarray(A), np.asarray(sign_pattern), np.asarray(indices))
    y_batched = jax.block_until_ready(cs_op(xb))           # (batch, n_meas)
    y_single = jax.block_until_ready(cs_op(xb[0]))         # (n_meas,)  module-style call

    assert y_batched.shape == (batch, n_measurements)
    assert y_single.shape == (n_measurements,)
    np.testing.assert_allclose(np.asarray(y_batched), y_ref, rtol=2e-2, atol=2e-2)
    np.testing.assert_allclose(np.asarray(y_single), y_ref[0], rtol=2e-2, atol=2e-2)

    # --- high-accuracy path: bf16 hi/lo split (3 MXU passes, ~f32 accuracy) ------------
    cs_op_hi = make_cs_operator(np.asarray(A), np.asarray(sign_pattern),
                                np.asarray(indices), precision="high")
    y_hi = jax.block_until_ready(cs_op_hi(xb))
    np.testing.assert_allclose(np.asarray(y_hi), y_ref, rtol=1e-3, atol=1e-3)

    print("KERNEL_OK")
</pallas_src>

<mosaic_0001>
module attributes {stable_mosaic.version = 11 : i64} {
  func.func @cs_fused_kernel(%arg0: i32, %arg1: memref<8x256xbf16, #tpu.memory_space<vmem>>, %arg2: memref<256x128xbf16, #tpu.memory_space<vmem>>, %arg3: memref<8x128xf32, #tpu.memory_space<vmem>>) attributes {dimension_semantics = [#tpu.dimension_semantics<parallel>], iteration_bounds = array<i64: 1>, scalar_prefetch = 0 : i64, scratch_operands = 0 : i64, tpu.core_type = #tpu.core_type<tc>, window_params = [{pipeline_mode = #tpu.pipeline_mode<synchronous>, transform_indices = @transform_0, window_bounds = array<i64: 8, 256>}, {transform_indices = @transform_1, window_bounds = array<i64: 256, 128>}, {transform_indices = @transform_2, window_bounds = array<i64: 8, 128>}]} {
    %c0 = arith.constant 0 : index
    %c0_0 = arith.constant 0 : index
    %0 = vector.load %arg1[%c0, %c0_0] : memref<8x256xbf16, #tpu.memory_space<vmem>>, vector<8x256xbf16>
    %c0_1 = arith.constant 0 : index
    %c0_2 = arith.constant 0 : index
    %1 = vector.load %arg2[%c0_1, %c0_2] : memref<256x128xbf16, #tpu.memory_space<vmem>>, vector<256x128xbf16>
    %cst = arith.constant dense<0.000000e+00> : vector<8x128xf32>
    %2 = tpu.matmul %0, %1, %cst {dimension_numbers = #tpu.dot_dimension_numbers<[1], [0], [0], [1], [0, 0, 1, 1], [], []>} : vector<8x256xbf16>, vector<256x128xbf16>, vector<8x128xf32> -> vector<8x128xf32>
    %c0_3 = arith.constant 0 : index
    %c0_4 = arith.constant 0 : index
    %3 = vector.load %arg3[%c0_3, %c0_4] : memref<8x128xf32, #tpu.memory_space<vmem>>, vector<8x128xf32>
    tpu.vector_store %arg3[%c0_3, %c0_4], %2 {strides = array<i32>} : memref<8x128xf32, #tpu.memory_space<vmem>>, vector<8x128xf32>,
    return
  }
  func.func @transform_0(%arg0: i32) -> (i32, i32) {
    %c0_i32 = arith.constant 0 : i32
    %c0_i32_0 = arith.constant 0 : i32
    %c0_i32_1 = arith.constant 0 : i32
    return %c0_i32, %c0_i32_0 : i32, i32
  }
  func.func @transform_1(%arg0: i32) -> (i32, i32) {
    %c0_i32 = arith.constant 0 : i32
    %c0_i32_0 = arith.constant 0 : i32
    return %c0_i32, %arg0 : i32, i32
  }
  func.func @transform_2(%arg0: i32) -> (i32, i32) {
    %c0_i32 = arith.constant 0 : i32
    %c0_i32_0 = arith.constant 0 : i32
    return %c0_i32, %arg0 : i32, i32
  }
}

</mosaic_0001>

<llo_original>
// kernel: forward.1
$region0: #{forward.1}
  #allocation0 [shape = 'u32[]', space=smem, size = 0x4, offset = 0x4, fixed_abs, tag = 'smem constant byte address 0x4 - core index']
  #allocation1 [shape = 'u32[144,128]{1,0:T(1,128)}', space=vmem, size = 0x12000, scoped, tag = 'internal scratch']
  %s0 = inlined_call_operand.vmem [shape: bf16[8,256], index: 0, kind: input, shape index: {}]
  %s1 = inlined_call_operand.vmem [shape: bf16[256,128], index: 1, kind: input, shape index: {}]
  %s2 = inlined_call_operand.hbm [shape: f32[8,128], index: 2, kind: output, shape index: {}]
  %s3 = sld [smem:[#allocation0]]
  $region18: #{forward.1} parent=0
    _
  %s5 = ssub.s32 1, %s3
  %s6 = scalar_select 0, %s5, %s3
  $region1: #{forward.1} parent=0
    #allocation2 [shape = 'u8[4096]{0}', space=vmem, size = 0x1000, scoped, tag = 'output window, operand 0, single buffered']
    #allocation3 [shape = 's32[1]{0}', space=sflag, size = 0x4, scoped, tag = 'scoped memory for forward.1']
    %7 = vsyncpa [#allocation3], 0
    // Predicated region
    $region2: #{forward.1} parent=1 // pred_check
      _
    $region3: #{forward.1} parent=1 // pred_check_branch
      %9 = sbr.rel (0) target = $region5
    $region4: #{forward.1} parent=1 // pred_region
      _
    $region5: #{forward.1} parent=1 // pred_fallthru
      _
    // Predicated region
    $region6: #{forward.1} parent=1 // pred_check
      _
    $region7: #{forward.1} parent=1 // pred_check_branch
      %11 = sbr.rel (0) target = $region9
    $region8: #{forward.1} parent=1 // pred_region
      _
    $region9: #{forward.1} parent=1 // pred_fallthru
      _
    %v13 = vld [vmem:[%s0] sm:$0xff]
    %v14 = vld [vmem:[%s1] sm:$0xf]
    %v15 = vld [vmem:[%s1 + $0x4] sm:$0xf]
    %v16 = vld [vmem:[%s1 + $0x8] sm:$0xf]
    %v17 = vld [vmem:[%s1 + $0xc] sm:$0xf]
    %v18 = vld [vmem:[%s1 + $0x10] sm:$0xf]
    %v19 = vld [vmem:[%s1 + $0x14] sm:$0xf]
    %v20 = vld [vmem:[%s1 + $0x18] sm:$0xf]
    %v21 = vld [vmem:[%s1 + $0x1c] sm:$0xf]
    %v22 = vld [vmem:[%s1 + $0x20] sm:$0xf]
    %v23 = vld [vmem:[%s1 + $0x24] sm:$0xf]
    %v24 = vld [vmem:[%s1 + $0x28] sm:$0xf]
    %v25 = vld [vmem:[%s1 + $0x2c] sm:$0xf]
    %v26 = vld [vmem:[%s1 + $0x30] sm:$0xf]
    %v27 = vld [vmem:[%s1 + $0x34] sm:$0xf]
    %v28 = vld [vmem:[%s1 + $0x38] sm:$0xf]
    %v29 = vld [vmem:[%s1 + $0x3c] sm:$0xf]
    %v30 = vld [vmem:[%s1 + $0x40] sm:$0xf]
    %v31 = vld [vmem:[%s1 + $0x44] sm:$0xf]
    %v32 = vld [vmem:[%s1 + $0x48] sm:$0xf]
    %v33 = vld [vmem:[%s1 + $0x4c] sm:$0xf]
    %v34 = vld [vmem:[%s1 + $0x50] sm:$0xf]
    %v35 = vld [vmem:[%s1 + $0x54] sm:$0xf]
    %v36 = vld [vmem:[%s1 + $0x58] sm:$0xf]
    %v37 = vld [vmem:[%s1 + $0x5c] sm:$0xf]
    %v38 = vld [vmem:[%s1 + $0x60] sm:$0xf]
    %v39 = vld [vmem:[%s1 + $0x64] sm:$0xf]
    %v40 = vld [vmem:[%s1 + $0x68] sm:$0xf]
    %v41 = vld [vmem:[%s1 + $0x6c] sm:$0xf]
    %v42 = vld [vmem:[%s1 + $0x70] sm:$0xf]
    %v43 = vld [vmem:[%s1 + $0x74] sm:$0xf]
    %v44 = vld [vmem:[%s1 + $0x78] sm:$0xf]
    %v45 = vld [vmem:[%s1 + $0x7c] sm:$0xf]
    %v47 = vunpack.c.l.b16 %v13
    %v48 = vunpack.c.h.b16 %v13
    %v49 = vpack.c.b16 %v47, %v47
    %v50 = vpack.c.b16 %v48, %v48
    %v85 = vunpack.c.l.b16 %v14
    %v86 = vunpack.c.l.b16 %v15
    %v87 = vunpack.c.l.b16 %v16
    %v88 = vunpack.c.l.b16 %v17
    %v89 = vunpack.c.l.b16 %v18
    %v90 = vunpack.c.l.b16 %v19
    %v91 = vunpack.c.l.b16 %v20
    %v92 = vunpack.c.l.b16 %v21
    %v93 = vunpack.c.l.b16 %v22
    %v94 = vunpack.c.l.b16 %v23
    %v95 = vunpack.c.l.b16 %v24
    %v96 = vunpack.c.l.b16 %v25
    %v97 = vunpack.c.l.b16 %v26
    %v98 = vunpack.c.l.b16 %v27
    %v99 = vunpack.c.l.b16 %v28
    %v100 = vunpack.c.l.b16 %v29
    %v101 = vunpack.c.l.b16 %v30
    %v102 = vunpack.c.l.b16 %v31
    %v103 = vunpack.c.l.b16 %v32
    %v104 = vunpack.c.l.b16 %v33
    %v105 = vunpack.c.l.b16 %v34
    %v106 = vunpack.c.l.b16 %v35
    %v107 = vunpack.c.l.b16 %v36
    %v108 = vunpack.c.l.b16 %v37
    %v109 = vunpack.c.l.b16 %v38
    %v110 = vunpack.c.l.b16 %v39
    %v111 = vunpack.c.l.b16 %v40
    %v112 = vunpack.c.l.b16 %v41
    %v113 = vunpack.c.l.b16 %v42
    %v114 = vunpack.c.l.b16 %v43
    %v115 = vunpack.c.l.b16 %v44
    %v116 = vunpack.c.l.b16 %v45
    %v117 = vpack.c.b16 %v86, %v85
    %v118 = vpack.c.b16 %v88, %v87
    %v119 = vpack.c.b16 %v90, %v89
    %v120 = vpack.c.b16 %v92, %v91
    %v121 = vpack.c.b16 %v94, %v93
    %v122 = vpack.c.b16 %v96, %v95
    %v123 = vpack.c.b16 %v98, %v97
    %v124 = vpack.c.b16 %v100, %v99
    %v125 = vpack.c.b16 %v102, %v101
    %v126 = vpack.c.b16 %v104, %v103
    %v127 = vpack.c.b16 %v106, %v105
    %v128 = vpack.c.b16 %v108, %v107
    %v129 = vpack.c.b16 %v110, %v109
    %v130 = vpack.c.b16 %v112, %v111
    %v131 = vpack.c.b16 %v114, %v113
    %v132 = vpack.c.b16 %v116, %v115
    %149 = vmatprep.subr.bf16.mxu0 0
    %150 = vmatpush1.bf16.msra.mxu0 %v117
    %151 = vmatprep.subr.bf16.mxu0 0
    %152 = vmatpush1.bf16.msra.mxu0 %v118
    %153 = vmatprep.subr.bf16.mxu0 0
    %154 = vmatpush1.bf16.msra.mxu0 %v119
    %155 = vmatprep.subr.bf16.mxu0 0
    %156 = vmatpush1.bf16.msra.mxu0 %v120
    %157 = vmatprep.subr.bf16.mxu0 0
    %158 = vmatpush1.bf16.msra.mxu0 %v121
    %159 = vmatprep.subr.bf16.mxu0 0
    %160 = vmatpush1.bf16.msra.mxu0 %v122
    %161 = vmatprep.subr.bf16.mxu0 0
    %162 = vmatpush1.bf16.msra.mxu0 %v123
    %163 = vmatprep.subr.bf16.mxu0 0
    %164 = vmatpush1.bf16.msra.mxu0 %v124
    %165 = vmatprep.subr.bf16.mxu0 0
    %166 = vmatpush1.bf16.msra.mxu0 %v125
    %167 = vmatprep.subr.bf16.mxu0 0
    %168 = vmatpush1.bf16.msra.mxu0 %v126
    %169 = vmatprep.subr.bf16.mxu0 0
    %170 = vmatpush1.bf16.msra.mxu0 %v127
    %171 = vmatprep.subr.bf16.mxu0 0
    %172 = vmatpush1.bf16.msra.mxu0 %v128
    %173 = vmatprep.subr.bf16.mxu0 0
    %174 = vmatpush1.bf16.msra.mxu0 %v129
    %175 = vmatprep.subr.bf16.mxu0 0
    %176 = vmatpush1.bf16.msra.mxu0 %v130
    %177 = vmatprep.subr.bf16.mxu0 0
    %178 = vmatpush1.bf16.msra.mxu0 %v131
    %179 = vmatprep.subr.bf16.mxu0 0
    %180 = vmatpush1.bf16.msra.mxu0 %v132
    %181 = vmatprep.mubr.bf16.mxu0 %v50
    %182 = vmatmul.mubr.bf16.gmra.mrb[0].mxu0 %v49
    %v183 = vpop.f32.mrb[0].mxu0
    %v184 = vadd.f32 0.0, %v183
    %v185 = vpop.f32.mrb[0].mxu0
    %v186 = vpop.f32.mrb[0].mxu0
    %v187 = vpop.f32.mrb[0].mxu0
    %188 = vdwg.mxu0
    %189 = vst [vmem:[#allocation2] sm:$0xff] %v184
    // Predicated region
    $region10: #{forward.1} parent=1 // pred_check
      _
    $region11: #{forward.1} parent=1 // pred_check_branch
      %191 = sbr.rel (0) target = $region13
    $region12: #{forward.1} parent=1 // pred_region
      %s193 = ssub.s32 128, 128
      %194 = vsyncadd [#allocation3], %s193
      %s196 = sshll.u32 [#allocation2], 4
      %s197 = int_to_ptr.vmem [resolvable:$true] %s196
      %199 = dma.vmem_to_hbm [thread:$0]  %s197, 128, %s2, [#allocation3]
    $region13: #{forward.1} parent=1 // pred_fallthru
      _
    // Predicated region
    $region14: #{forward.1} parent=1 // pred_check
      _
    $region15: #{forward.1} parent=1 // pred_check_branch
      %201 = sbr.rel (0) target = $region17
    $region16: #{forward.1} parent=1 // pred_region
      %202 = dma.done [#allocation3], 128
    $region17: #{forward.1} parent=1 // pred_fallthru
      _
    %203 = vsyncpa [#allocation3], 1

</llo_original>
